<compile_context>
chip_gen: v7x
topology: tpu7x:2x2x1
jax: 0.10.0
libtpu: 0.0.40
codegen_flags: <defaults>
</compile_context>

<pallas_src>
import jax
import jax.numpy as jnp
from jax.experimental import pallas as pl
from jax.experimental.pallas import tpu as pltpu


def _vq_kernel(x_ref, e_ref, e2_ref, q_ref, c_ref):
    x = x_ref[...]                       # (tm, D) f32 rows tile
    e = e_ref[...]                       # (K, D)  f32 codebook (constant block)
    e2 = e2_ref[...]                     # (1, K)  f32 codebook squared norms
    tm = x.shape[0]
    K = e.shape[0]

    # Squared Euclidean distances (monotone w.r.t. torch.cdist -> same argmin).
    x2 = jnp.sum(x * x, axis=-1, keepdims=True)                      # (tm, 1)
    xe = jax.lax.dot_general(                                        # (tm, K) on MXU
        x, e, (((1,), (1,)), ((), ())), preferred_element_type=jnp.float32)
    d2 = x2 - 2.0 * xe + e2                                          # (tm, K)

    codes = jnp.argmin(d2, axis=-1).astype(jnp.int32)                # (tm,)
    c_ref[...] = codes.reshape(1, tm)                                # lane-dense store

    # Gather selected codebook rows via one-hot matmul (MXU).
    iota_k = jax.lax.broadcasted_iota(jnp.int32, (tm, K), 1)
    onehot = (codes[:, None] == iota_k).astype(x.dtype)              # (tm, K)
    q = jnp.dot(onehot, e, preferred_element_type=jnp.float32)       # (tm, D)

    # Forward value of the straight-through estimator is just `quantize`.
    q_ref[...] = q.astype(q_ref.dtype)


def _vmem_bytes_estimate(tm, D, K):
    """Rough per-call VMEM footprint (double-buffered pipelined blocks + intermediates)."""
    f32 = 4
    buffers = (
        2 * tm * D * f32        # input rows (double-buffered)
        + 2 * tm * D * f32      # quantize output (double-buffered)
        + 2 * K * D * f32       # codebook block
        + 2 * K * f32           # e2 block
        + 2 * tm * 4            # codes output block
    )
    intermediates = 3 * tm * K * f32 + tm * D * f32   # d2, onehot, xe, q
    return buffers + intermediates


def _choose_tile_rows(N, D, K, max_tile=512):
    """Pick a row tile: single block for small N, else a 128-multiple under a VMEM budget."""
    if N <= max_tile:
        return max(8, ((N + 7) // 8) * 8)          # one block covering everything
    tm = max_tile                                   # multiple of 128 (lane-dense codes)
    while tm > 128 and _vmem_bytes_estimate(tm, D, K) > 20 * 1024 * 1024:
        tm //= 2
    return tm


def vector_quantize(x, embed, *, max_tile_rows=512):
    """x: (B, M, D) float32, embed: (K, D) float32 -> (quantize (B,M,D), codes (B,M) int32)."""
    B, M, D = x.shape
    K, D2 = embed.shape
    assert D == D2
    N = B * M

    tm = _choose_tile_rows(N, D, K, max_tile_rows)
    N_pad = ((N + tm - 1) // tm) * tm
    num_tiles = N_pad // tm

    x_flat = x.reshape(N, D)
    if N_pad != N:
        # Zero-pad the tail tile; padded rows are dropped after the call.
        x_flat = jnp.pad(x_flat, ((0, N_pad - N), (0, 0)))

    # Codebook-invariant work hoisted out of the kernel: ||e||^2 as a (1, K) row.
    e2 = jnp.sum(embed * embed, axis=-1)[None, :]

    vmem_limit = int(min(max(2 * _vmem_bytes_estimate(tm, D, K), 32 * 1024 * 1024),
                         56 * 1024 * 1024))

    quant_flat, codes_row = pl.pallas_call(
        _vq_kernel,
        out_shape=(
            jax.ShapeDtypeStruct((N_pad, D), x.dtype),
            jax.ShapeDtypeStruct((1, N_pad), jnp.int32),   # lane-dense codes row
        ),
        grid_spec=pltpu.PrefetchScalarGridSpec(
            num_scalar_prefetch=0,
            grid=(num_tiles,),
            in_specs=[
                pl.BlockSpec((tm, D), lambda i: (i, 0)),   # input rows tile
                pl.BlockSpec((K, D), lambda i: (0, 0)),    # full codebook (constant)
                pl.BlockSpec((1, K), lambda i: (0, 0)),    # precomputed ||e||^2
            ],
            out_specs=[
                pl.BlockSpec((tm, D), lambda i: (i, 0)),   # quantize rows tile
                pl.BlockSpec((1, tm), lambda i: (0, i)),   # codes, lane-dense
            ],
        ),
        compiler_params=pltpu.CompilerParams(
            dimension_semantics=("parallel",),
            vmem_limit_bytes=vmem_limit,
        ),
    )(x_flat, embed, e2)

    quantize = quant_flat[:N].reshape(B, M, D)
    codes = codes_row[0, :N].reshape(B, M)
    return quantize, codes


def _reference(x, embed):
    # Plain-JAX reference mimicking the PyTorch forward (eval mode).
    d = jnp.sqrt(
        jnp.maximum(
            jnp.sum(x * x, axis=-1, keepdims=True)
            - 2.0 * jnp.einsum("bmd,kd->bmk", x, embed)
            + jnp.sum(embed * embed, axis=-1)[None, None, :],
            0.0,
        )
    )
    codes = jnp.argmin(d, axis=-1)
    quantize = embed[codes]
    return quantize, codes


if __name__ == "__main__":
    # Small shapes consistent with the module: v_cluster=64, n_embed=32.
    v_cluster, n_embed = 64, 32
    B, M = 2, 16

    key = jax.random.PRNGKey(0)
    k_embed, k_x = jax.random.split(key)
    embed = jax.random.normal(k_embed, (v_cluster, n_embed), dtype=jnp.float32)
    x = jax.random.normal(k_x, (B, M, n_embed), dtype=jnp.float32)

    quantize, codes = vector_quantize(x, embed)
    jax.block_until_ready((quantize, codes))

    # Sanity check against pure-JAX reference.
    q_ref, c_ref = _reference(x, embed)
    assert jnp.array_equal(codes, c_ref.astype(jnp.int32)), "codes mismatch"
    assert jnp.allclose(quantize, q_ref, atol=1e-5, rtol=1e-5), "quantize mismatch"

    # Also exercise a non-divisible / multi-tile shape (padding + lane-dense codes path).
    B2, M2 = 3, 37
    x2 = jax.random.normal(jax.random.PRNGKey(1), (B2, M2, n_embed), dtype=jnp.float32)
    q2, c2 = vector_quantize(x2, embed, max_tile_rows=128)
    jax.block_until_ready((q2, c2))
    q2_ref, c2_ref = _reference(x2, embed)
    assert jnp.array_equal(c2, c2_ref.astype(jnp.int32)), "codes mismatch (padded)"
    assert jnp.allclose(q2, q2_ref, atol=1e-5, rtol=1e-5), "quantize mismatch (padded)"

    print("KERNEL_OK")
</pallas_src>

<mosaic_0001>
module attributes {stable_mosaic.version = 11 : i64} {
  func.func @_vq_kernel(%arg0: i32, %arg1: memref<32x32xf32, #tpu.memory_space<vmem>>, %arg2: memref<64x32xf32, #tpu.memory_space<vmem>>, %arg3: memref<1x64xf32, #tpu.memory_space<vmem>>, %arg4: memref<32x32xf32, #tpu.memory_space<vmem>>, %arg5: memref<1x32xi32, #tpu.memory_space<vmem>>) attributes {dimension_semantics = [#tpu.dimension_semantics<parallel>], iteration_bounds = array<i64: 1>, scalar_prefetch = 0 : i64, scratch_operands = 0 : i64, tpu.core_type = #tpu.core_type<tc>, window_params = [{transform_indices = @transform_0, window_bounds = array<i64: 32, 32>}, {pipeline_mode = #tpu.pipeline_mode<synchronous>, transform_indices = @transform_1, window_bounds = array<i64: 64, 32>}, {pipeline_mode = #tpu.pipeline_mode<synchronous>, transform_indices = @transform_2, window_bounds = array<i64: 1, 64>}, {transform_indices = @transform_3, window_bounds = array<i64: 32, 32>}, {transform_indices = @transform_4, window_bounds = array<i64: 1, 32>}]} {
    %c0 = arith.constant 0 : index
    %c0_0 = arith.constant 0 : index
    %0 = vector.load %arg1[%c0, %c0_0] : memref<32x32xf32, #tpu.memory_space<vmem>>, vector<32x32xf32>
    %c0_1 = arith.constant 0 : index
    %c0_2 = arith.constant 0 : index
    %1 = vector.load %arg2[%c0_1, %c0_2] : memref<64x32xf32, #tpu.memory_space<vmem>>, vector<64x32xf32>
    %c0_3 = arith.constant 0 : index
    %c0_4 = arith.constant 0 : index
    %2 = vector.load %arg3[%c0_3, %c0_4] : memref<1x64xf32, #tpu.memory_space<vmem>>, vector<1x64xf32>
    %3 = arith.mulf %0, %0 : vector<32x32xf32>
    %cst = arith.constant dense<0.000000e+00> : vector<32xf32>
    %4 = vector.multi_reduction <add>, %3, %cst [1] : vector<32x32xf32> to vector<32xf32>
    %5 = vector.shape_cast %4 : vector<32xf32> to vector<32x1xf32>
    %cst_5 = arith.constant dense<0.000000e+00> : vector<32x64xf32>
    %6 = tpu.matmul %0, %1, %cst_5 {dimension_numbers = #tpu.dot_dimension_numbers<[1], [1], [0], [0], [0, 0, 1, 0], [], []>} : vector<32x32xf32>, vector<64x32xf32>, vector<32x64xf32> -> vector<32x64xf32>
    %cst_6 = arith.constant 2.000000e+00 : f32
    %7 = vector.broadcast %cst_6 : f32 to vector<32x64xf32>
    %8 = arith.mulf %7, %6 : vector<32x64xf32>
    %9 = vector.broadcast %5 : vector<32x1xf32> to vector<32x64xf32>
    %10 = arith.subf %9, %8 : vector<32x64xf32>
    %11 = vector.broadcast %2 : vector<1x64xf32> to vector<32x64xf32>
    %12 = arith.addf %10, %11 : vector<32x64xf32>
    %13 = tpu.reduce_index %12 {axis = 1 : i32, kind = #tpu.reduction_kind<arg_min>} : vector<32x64xf32> -> vector<32xi32>
    %14 = vector.shape_cast %13 : vector<32xi32> to vector<1x32xi32>
    %c0_7 = arith.constant 0 : index
    %c0_8 = arith.constant 0 : index
    %15 = vector.load %arg5[%c0_7, %c0_8] : memref<1x32xi32, #tpu.memory_space<vmem>>, vector<1x32xi32>
    tpu.vector_store %arg5[%c0_7, %c0_8], %14 {strides = array<i32>} : memref<1x32xi32, #tpu.memory_space<vmem>>, vector<1x32xi32>,
    %16 = tpu.iota {dimensions = array<i32: 1>} : vector<32x64xi32>
    %17 = vector.shape_cast %13 : vector<32xi32> to vector<32x1xi32>
    %18 = vector.broadcast %17 : vector<32x1xi32> to vector<32x64xi32>
    %19 = arith.cmpi eq, %18, %16 : vector<32x64xi32>
    %20 = arith.extui %19 : vector<32x64xi1> to vector<32x64xi32>
    %21 = arith.sitofp %20 : vector<32x64xi32> to vector<32x64xf32>
    %cst_9 = arith.constant dense<0.000000e+00> : vector<32x32xf32>
    %22 = tpu.matmul %21, %1, %cst_9 {dimension_numbers = #tpu.dot_dimension_numbers<[1], [0], [0], [1], [0, 0, 1, 1], [], []>} : vector<32x64xf32>, vector<64x32xf32>, vector<32x32xf32> -> vector<32x32xf32>
    %c0_10 = arith.constant 0 : index
    %c0_11 = arith.constant 0 : index
    %23 = vector.load %arg4[%c0_10, %c0_11] : memref<32x32xf32, #tpu.memory_space<vmem>>, vector<32x32xf32>
    tpu.vector_store %arg4[%c0_10, %c0_11], %22 {strides = array<i32>} : memref<32x32xf32, #tpu.memory_space<vmem>>, vector<32x32xf32>,
    return
  }
  func.func @transform_0(%arg0: i32) -> (i32, i32) {
    %c0_i32 = arith.constant 0 : i32
    %c0_i32_0 = arith.constant 0 : i32
    return %arg0, %c0_i32 : i32, i32
  }
  func.func @transform_1(%arg0: i32) -> (i32, i32) {
    %c0_i32 = arith.constant 0 : i32
    %c0_i32_0 = arith.constant 0 : i32
    %c0_i32_1 = arith.constant 0 : i32
    return %c0_i32, %c0_i32_0 : i32, i32
  }
  func.func @transform_2(%arg0: i32) -> (i32, i32) {
    %c0_i32 = arith.constant 0 : i32
    %c0_i32_0 = arith.constant 0 : i32
    %c0_i32_1 = arith.constant 0 : i32
    return %c0_i32, %c0_i32_0 : i32, i32
  }
  func.func @transform_3(%arg0: i32) -> (i32, i32) {
    %c0_i32 = arith.constant 0 : i32
    %c0_i32_0 = arith.constant 0 : i32
    return %arg0, %c0_i32 : i32, i32
  }
  func.func @transform_4(%arg0: i32) -> (i32, i32) {
    %c0_i32 = arith.constant 0 : i32
    %c0_i32_0 = arith.constant 0 : i32
    return %c0_i32, %arg0 : i32, i32
  }
}

</mosaic_0001>

<llo_original>
// kernel: tpu_custom_call.1
$region0: #{tpu_custom_call.1}
  #allocation0 [shape = 'u32[]', space=smem, size = 0x4, offset = 0x4, fixed_abs, tag = 'smem constant byte address 0x4 - core index']
  #allocation1 [shape = 'u32[144,128]{1,0:T(1,128)}', space=vmem, size = 0x12000, scoped, tag = 'internal scratch']
  %s0 = inlined_call_operand.vmem [shape: f32[32,32], index: 0, kind: input, shape index: {}]
  %s1 = inlined_call_operand.vmem [shape: f32[64,32], index: 1, kind: input, shape index: {}]
  %s2 = inlined_call_operand.vmem [shape: f32[1,64], index: 2, kind: input, shape index: {}]
  %s3 = inlined_call_operand.hbm [shape: f32[32,32], index: 3, kind: output, shape index: {0}]
  %s4 = inlined_call_operand.hbm [shape: s32[1,32], index: 4, kind: output, shape index: {1}]
  %5 = xla_tuple %s3, %s4
  %s6 = sld [smem:[#allocation0]]
  $region30: #{tpu_custom_call.1} parent=0
    _
  %s8 = ssub.s32 1, %s6
  %s9 = scalar_select 0, %s8, %s6
  $region1: #{tpu_custom_call.1} parent=0
    #allocation2 [shape = 'u8[16384]{0}', space=vmem, size = 0x4000, scoped, tag = 'output window, operand 0, single buffered']
    #allocation3 [shape = 's32[1]{0}', space=sflag, size = 0x4, scoped, tag = 'scoped memory for tpu_custom_call.1']
    #allocation4 [shape = 'u8[512]{0}', space=vmem, size = 0x400, scoped, tag = 'output window, operand 1, single buffered']
    #allocation5 [shape = 's32[1]{0}', space=sflag, size = 0x4, scoped, tag = 'scoped memory for tpu_custom_call.1']
    %10 = vsyncpa [#allocation3], 0
    %11 = vsyncpa [#allocation5], 0
    // Predicated region
    $region2: #{tpu_custom_call.1} parent=1 // pred_check
      _
    $region3: #{tpu_custom_call.1} parent=1 // pred_check_branch
      %13 = sbr.rel (0) target = $region5
    $region4: #{tpu_custom_call.1} parent=1 // pred_region
      _
    $region5: #{tpu_custom_call.1} parent=1 // pred_fallthru
      _
    // Predicated region
    $region6: #{tpu_custom_call.1} parent=1 // pred_check
      _
    $region7: #{tpu_custom_call.1} parent=1 // pred_check_branch
      %15 = sbr.rel (0) target = $region9
    $region8: #{tpu_custom_call.1} parent=1 // pred_region
      _
    $region9: #{tpu_custom_call.1} parent=1 // pred_fallthru
      _
    // Predicated region
    $region10: #{tpu_custom_call.1} parent=1 // pred_check
      _
    $region11: #{tpu_custom_call.1} parent=1 // pred_check_branch
      %17 = sbr.rel (0) target = $region13
    $region12: #{tpu_custom_call.1} parent=1 // pred_region
      _
    $region13: #{tpu_custom_call.1} parent=1 // pred_fallthru
      _
    %v18 = vld [vmem:[%s0] sm:$0xff]
    %v19 = vld [vmem:[%s0 + $0x8] sm:$0xff]
    %v20 = vld [vmem:[%s0 + $0x10] sm:$0xff]
    %v21 = vld [vmem:[%s0 + $0x18] sm:$0xff]
    %v22 = vld [vmem:[%s1] sm:$0xff]
    %v23 = vld [vmem:[%s1 + $0x8] sm:$0xff]
    %v24 = vld [vmem:[%s1 + $0x10] sm:$0xff]
    %v25 = vld [vmem:[%s1 + $0x18] sm:$0xff]
    %v26 = vld [vmem:[%s1 + $0x20] sm:$0xff]
    %v27 = vld [vmem:[%s1 + $0x28] sm:$0xff]
    %v28 = vld [vmem:[%s1 + $0x30] sm:$0xff]
    %v29 = vld [vmem:[%s1 + $0x38] sm:$0xff]
    %v30 = vld [vmem:[%s2] sm:$0x1]
    %v31 = vmul.f32 %v18, %v18
    %v32 = vmul.f32 %v19, %v19
    %v33 = vmul.f32 %v20, %v20
    %v34 = vmul.f32 %v21, %v21
    %vm35 = vcmask 261120
    %v36 = vsel %vm35, %v31, 0.0
    %37 = vadd.xlane.f32.xlu0 %v36
    %v38 = vpop.xlane.xlu0 %37
    %v39 = vsel %vm35, %v32, 0.0
    %40 = vadd.xlane.f32.xlu0 %v39
    %v41 = vpop.xlane.xlu0 %40
    %v42 = vsel %vm35, %v33, 0.0
    %43 = vadd.xlane.f32.xlu0 %v42
    %v44 = vpop.xlane.xlu0 %43
    %v45 = vsel %vm35, %v34, 0.0
    %46 = vadd.xlane.f32.xlu0 %v45
    %v47 = vpop.xlane.xlu0 %46
    %v49 = vsel %vm35, %v18, 0
    %v52 = vsel %vm35, %v19, 0
    %v55 = vsel %vm35, %v20, 0
    %v58 = vsel %vm35, %v21, 0
    %v61 = vsel %vm35, %v22, 0
    %v64 = vsel %vm35, %v23, 0
    %v67 = vsel %vm35, %v24, 0
    %v70 = vsel %vm35, %v25, 0
    %v73 = vsel %vm35, %v26, 0
    %v76 = vsel %vm35, %v27, 0
    %v79 = vsel %vm35, %v28, 0
    %v82 = vsel %vm35, %v29, 0
    %84 = vmatprep.subr.mxu0 0.0
    %85 = vmatpush1.xpose.msra.mxu0 %v61
    %86 = vmatprep.subr.mxu0 0.0
    %87 = vmatpush1.xpose.msra.mxu0 %v64
    %88 = vmatprep.subr.mxu0 0.0
    %89 = vmatpush1.xpose.msra.mxu0 %v67
    %90 = vmatprep.subr.mxu0 0.0
    %91 = vmatpush1.xpose.msra.mxu0 %v70
    %92 = vmatprep.subr.mxu0 0.0
    %93 = vmatpush1.xpose.msra.mxu0 %v73
    %94 = vmatprep.subr.mxu0 0.0
    %95 = vmatpush1.xpose.msra.mxu0 %v76
    %96 = vmatprep.subr.mxu0 0.0
    %97 = vmatpush1.xpose.msra.mxu0 %v79
    %98 = vmatprep.subr.mxu0 0.0
    %99 = vmatpush1.xpose.msra.mxu0 %v82
    %100 = vmatprep.subr.mxu0 0.0
    %101 = vmatpush1.xpose.msra.mxu0 0.0
    %102 = vmatprep.subr.mxu0 0.0
    %103 = vmatpush1.xpose.msra.mxu0 0.0
    %104 = vmatprep.subr.mxu0 0.0
    %105 = vmatpush1.xpose.msra.mxu0 0.0
    %106 = vmatprep.subr.mxu0 0.0
    %107 = vmatpush1.xpose.msra.mxu0 0.0
    %108 = vmatprep.subr.mxu0 0.0
    %109 = vmatpush1.xpose.msra.mxu0 0.0
    %110 = vmatprep.subr.mxu0 0.0
    %111 = vmatpush1.xpose.msra.mxu0 0.0
    %112 = vmatprep.subr.mxu0 0.0
    %113 = vmatpush1.xpose.msra.mxu0 0.0
    %114 = vmatprep.subr.mxu0 0.0
    %115 = vmatpush1.xpose.msra.mxu0 0.0
    %116 = vmatprep.subr.mxu0 0.0
    %117 = vmatpush1.xpose.msra.mxu0 0.0
    %118 = vmatprep.subr.mxu0 0.0
    %119 = vmatpush1.xpose.msra.mxu0 0.0
    %120 = vmatprep.subr.mxu0 0.0
    %121 = vmatpush1.xpose.msra.mxu0 0.0
    %122 = vmatprep.subr.mxu0 0.0
    %123 = vmatpush1.xpose.msra.mxu0 0.0
    %124 = vmatprep.subr.mxu0 0.0
    %125 = vmatpush1.xpose.msra.mxu0 0.0
    %126 = vmatprep.subr.mxu0 0.0
    %127 = vmatpush1.xpose.msra.mxu0 0.0
    %128 = vmatprep.subr.mxu0 0.0
    %129 = vmatpush1.xpose.msra.mxu0 0.0
    %130 = vmatprep.subr.mxu0 0.0
    %131 = vmatpush1.xpose.msra.mxu0 0.0
    %132 = vmatprep.subr.mxu0 0.0
    %133 = vmatpush1.xpose.msra.mxu0 0.0
    %134 = vmatprep.subr.mxu0 0.0
    %135 = vmatpush1.xpose.msra.mxu0 0.0
    %136 = vmatprep.subr.mxu0 0.0
    %137 = vmatpush1.xpose.msra.mxu0 0.0
    %138 = vmatprep.subr.mxu0 0.0
    %139 = vmatpush1.xpose.msra.mxu0 0.0
    %140 = vmatprep.subr.mxu0 0.0
    %141 = vmatpush1.xpose.msra.mxu0 0.0
    %142 = vmatprep.subr.mxu0 0.0
    %143 = vmatpush1.xpose.msra.mxu0 0.0
    %144 = vmatprep.subr.mxu0 0.0
    %145 = vmatpush1.xpose.msra.mxu0 0.0
    %146 = vmatprep.subr.mxu0 0.0
    %147 = vmatpush1.xpose.msra.mxu0 0.0
    %148 = vmatprep.mubr.f32.mxu0 0.0
    %149 = vmatmul.mubr.f32.gmra.mrb[0].mxu0 %v49
    %v150 = vpop.f32.mrb[0].mxu0
    %v151 = vadd.f32 0.0, %v150
    %v152 = vpop.f32.mrb[0].mxu0
    %153 = vmatprep.mubr.f32.mxu0 0.0
    %154 = vmatmul.mubr.f32.gmra.mrb[0].mxu0 %v52
    %v155 = vpop.f32.mrb[0].mxu0
    %v156 = vadd.f32 0.0, %v155
    %v157 = vpop.f32.mrb[0].mxu0
    %158 = vmatprep.mubr.f32.mxu0 0.0
    %159 = vmatmul.mubr.f32.gmra.mrb[0].mxu0 %v55
    %v160 = vpop.f32.mrb[0].mxu0
    %v161 = vadd.f32 0.0, %v160
    %v162 = vpop.f32.mrb[0].mxu0
    %163 = vmatprep.mubr.f32.mxu0 0.0
    %164 = vmatmul.mubr.f32.gmra.mrb[0].mxu0 %v58
    %v165 = vpop.f32.mrb[0].mxu0
    %v166 = vadd.f32 0.0, %v165
    %v167 = vpop.f32.mrb[0].mxu0
    %168 = vdwg.mxu0
    %v169 = vmul.f32 %v151, 2.0
    %v170 = vmul.f32 %v156, 2.0
    %v171 = vmul.f32 %v161, 2.0
    %v172 = vmul.f32 %v166, 2.0
    %v173 = vsub.f32 %v38, %v169
    %v174 = vsub.f32 %v41, %v170
    %v175 = vsub.f32 %v44, %v171
    %v176 = vsub.f32 %v47, %v172
    %v178 = vlaneseq
    %v179 = vshrl.u32 %v178, 7
    %v180 = vsub.s32 0, %v179
    %v181 = vrot.slane %v30, %v180
    %v183 = vadd.f32 %v173, %v181
    %v184 = vadd.f32 %v174, %v181
    %v185 = vadd.f32 %v175, %v181
    %v186 = vadd.f32 %v176, %v181
    %vm187 = vcmask 523264
    %v188 = vsel %vm187, %v183, inf
    %189 = vmin.index.xlane.f32.xlu0 %v188
    %v190 = vpop.xlane.xlu0 %189
    %v191 = vsel %vm187, %v184, inf
    %192 = vmin.index.xlane.f32.xlu0 %v191
    %v193 = vpop.xlane.xlu0 %192
    %v194 = vsel %vm187, %v185, inf
    %195 = vmin.index.xlane.f32.xlu0 %v194
    %v196 = vpop.xlane.xlu0 %195
    %v197 = vsel %vm187, %v186, inf
    %198 = vmin.index.xlane.f32.xlu0 %v197
    %v199 = vpop.xlane.xlu0 %198
    %v200 = vlaneseq
    %v201 = vand.u32 %v200, 127
    %v202 = vlaneseq
    %v203 = vshrl.u32 %v202, 7
    %v204 = vsub.s32 %v201, %v203
    %v205 = vrot.slane %v190, %v204
    %v206 = vadd.s32 %v201, 4294967288
    %v207 = vlaneseq
    %v208 = vshrl.u32 %v207, 7
    %v209 = vsub.s32 %v206, %v208
    %v210 = vrot.slane %v193, %v209
    %vm211 = vcmask 130112
    %v212 = vsel %vm211, %v210, %v205
    %v213 = vadd.s32 %v201, 4294967280
    %v214 = vlaneseq
    %v215 = vshrl.u32 %v214, 7
    %v216 = vsub.s32 %v213, %v215
    %v217 = vrot.slane %v196, %v216
    %vm218 = vcmask 195712
    %v219 = vsel %vm218, %v217, %v212
    %v220 = vadd.s32 %v201, 4294967272
    %v221 = vlaneseq
    %v222 = vshrl.u32 %v221, 7
    %v223 = vsub.s32 %v220, %v222
    %v224 = vrot.slane %v199, %v223
    %vm225 = vcmask 261312
    %v226 = vsel %vm225, %v224, %v219
    %vm227 = vcmask 253952
    %228 = vst.msk [vmem:[#allocation4] sm:$0x1] %vm227, %v226
    %vm229 = vcmp.eq.s32.totalorder %v190, %v201
    %vm230 = vcmp.eq.s32.totalorder %v193, %v201
    %vm231 = vcmp.eq.s32.totalorder %v196, %v201
    %vm232 = vcmp.eq.s32.totalorder %v199, %v201
    %v233 = vsel %vm229, 1, 0
    %v234 = vsel %vm230, 1, 0
    %v235 = vsel %vm231, 1, 0
    %v236 = vsel %vm232, 1, 0
    %v237 = vcvt.s32.f32 %v233
    %v238 = vcvt.s32.f32 %v234
    %v239 = vcvt.s32.f32 %v235
    %v240 = vcvt.s32.f32 %v236
    %v242 = vsel %vm187, %v237, 0
    %v245 = vsel %vm187, %v238, 0
    %v248 = vsel %vm187, %v239, 0
    %v251 = vsel %vm187, %v240, 0
    %253 = vmatprep.subr.mxu0 0.0
    %254 = vmatpush1.msra.mxu0 %v22
    %255 = vmatprep.subr.mxu0 0.0
    %256 = vmatpush1.msra.mxu0 %v23
    %257 = vmatprep.subr.mxu0 0.0
    %258 = vmatpush1.msra.mxu0 %v24
    %259 = vmatprep.subr.mxu0 0.0
    %260 = vmatpush1.msra.mxu0 %v25
    %261 = vmatprep.subr.mxu0 0.0
    %262 = vmatpush1.msra.mxu0 %v26
    %263 = vmatprep.subr.mxu0 0.0
    %264 = vmatpush1.msra.mxu0 %v27
    %265 = vmatprep.subr.mxu0 0.0
    %266 = vmatpush1.msra.mxu0 %v28
    %267 = vmatprep.subr.mxu0 0.0
    %268 = vmatpush1.msra.mxu0 %v29
    %269 = vmatprep.subr.mxu0 0.0
    %270 = vmatpush1.msra.mxu0 0.0
    %271 = vmatprep.subr.mxu0 0.0
    %272 = vmatpush1.msra.mxu0 0.0
    %273 = vmatprep.subr.mxu0 0.0
    %274 = vmatpush1.msra.mxu0 0.0
    %275 = vmatprep.subr.mxu0 0.0
    %276 = vmatpush1.msra.mxu0 0.0
    %277 = vmatprep.subr.mxu0 0.0
    %278 = vmatpush1.msra.mxu0 0.0
    %279 = vmatprep.subr.mxu0 0.0
    %280 = vmatpush1.msra.mxu0 0.0
    %281 = vmatprep.subr.mxu0 0.0
    %282 = vmatpush1.msra.mxu0 0.0
    %283 = vmatprep.subr.mxu0 0.0
    %284 = vmatpush1.msra.mxu0 0.0
    %285 = vmatprep.subr.mxu0 0.0
    %286 = vmatpush1.msra.mxu0 0.0
    %287 = vmatprep.subr.mxu0 0.0
    %288 = vmatpush1.msra.mxu0 0.0
    %289 = vmatprep.subr.mxu0 0.0
    %290 = vmatpush1.msra.mxu0 0.0
    %291 = vmatprep.subr.mxu0 0.0
    %292 = vmatpush1.msra.mxu0 0.0
    %293 = vmatprep.subr.mxu0 0.0
    %294 = vmatpush1.msra.mxu0 0.0
    %295 = vmatprep.subr.mxu0 0.0
    %296 = vmatpush1.msra.mxu0 0.0
    %297 = vmatprep.subr.mxu0 0.0
    %298 = vmatpush1.msra.mxu0 0.0
    %299 = vmatprep.subr.mxu0 0.0
    %300 = vmatpush1.msra.mxu0 0.0
    %301 = vmatprep.subr.mxu0 0.0
    %302 = vmatpush1.msra.mxu0 0.0
    %303 = vmatprep.subr.mxu0 0.0
    %304 = vmatpush1.msra.mxu0 0.0
    %305 = vmatprep.subr.mxu0 0.0
    %306 = vmatpush1.msra.mxu0 0.0
    %307 = vmatprep.subr.mxu0 0.0
    %308 = vmatpush1.msra.mxu0 0.0
    %309 = vmatprep.subr.mxu0 0.0
    %310 = vmatpush1.msra.mxu0 0.0
    %311 = vmatprep.subr.mxu0 0.0
    %312 = vmatpush1.msra.mxu0 0.0
    %313 = vmatprep.subr.mxu0 0.0
    %314 = vmatpush1.msra.mxu0 0.0
    %315 = vmatprep.subr.mxu0 0.0
    %316 = vmatpush1.msra.mxu0 0.0
    %317 = vmatprep.mubr.f32.mxu0 0.0
    %318 = vmatmul.mubr.f32.gmra.mrb[0].mxu0 %v242
    %v319 = vpop.f32.mrb[0].mxu0
    %v320 = vadd.f32 0.0, %v319
    %v321 = vpop.f32.mrb[0].mxu0
    %322 = vmatprep.mubr.f32.mxu0 0.0
    %323 = vmatmul.mubr.f32.gmra.mrb[0].mxu0 %v245
    %v324 = vpop.f32.mrb[0].mxu0
    %v325 = vadd.f32 0.0, %v324
    %v326 = vpop.f32.mrb[0].mxu0
    %327 = vmatprep.mubr.f32.mxu0 0.0
    %328 = vmatmul.mubr.f32.gmra.mrb[0].mxu0 %v248
    %v329 = vpop.f32.mrb[0].mxu0
    %v330 = vadd.f32 0.0, %v329
    %v331 = vpop.f32.mrb[0].mxu0
    %332 = vmatprep.mubr.f32.mxu0 0.0
    %333 = vmatmul.mubr.f32.gmra.mrb[0].mxu0 %v251
    %v334 = vpop.f32.mrb[0].mxu0
    %v335 = vadd.f32 0.0, %v334
    %v336 = vpop.f32.mrb[0].mxu0
    %337 = vdwg.mxu0
    %338 = vst.msk [vmem:[#allocation2] sm:$0xff] %vm35, %v320
    %339 = vst.msk [vmem:[#allocation2 + $0x8] sm:$0xff] %vm35, %v325
    %340 = vst.msk [vmem:[#allocation2 + $0x10] sm:$0xff] %vm35, %v330
    %341 = vst.msk [vmem:[#allocation2 + $0x18] sm:$0xff] %vm35, %v335
    // Predicated region
    $region14: #{tpu_custom_call.1} parent=1 // pred_check
      _
    $region15: #{tpu_custom_call.1} parent=1 // pred_check_branch
      %343 = sbr.rel (0) target = $region17
    $region16: #{tpu_custom_call.1} parent=1 // pred_region
      %s345 = ssub.s32 512, 512
      %346 = vsyncadd [#allocation3], %s345
      %s347 = sshll.u32 [#allocation2], 4
      %s348 = int_to_ptr.vmem [resolvable:$true] %s347
      %353 = dma.vmem_to_hbm [thread:$0]  %s348, 512, %s3, [#allocation3], 128, 128, 8
    $region17: #{tpu_custom_call.1} parent=1 // pred_fallthru
      _
    // Predicated region
    $region18: #{tpu_custom_call.1} parent=1 // pred_check
      _
    $region19: #{tpu_custom_call.1} parent=1 // pred_check_branch
      %355 = sbr.rel (0) target = $region21
    $region20: #{tpu_custom_call.1} parent=1 // pred_region
      %s357 = ssub.s32 16, 16
      %358 = vsyncadd [#allocation5], %s357
      %s360 = sshll.u32 [#allocation4], 4
      %s361 = int_to_ptr.vmem [resolvable:$true] %s360
      %363 = dma.vmem_to_hbm [thread:$0]  %s361, 16, %s4, [#allocation5]
    $region21: #{tpu_custom_call.1} parent=1 // pred_fallthru
      _
    // Predicated region
    $region22: #{tpu_custom_call.1} parent=1 // pred_check
      _
    $region23: #{tpu_custom_call.1} parent=1 // pred_check_branch
      %365 = sbr.rel (0) target = $region25
    $region24: #{tpu_custom_call.1} parent=1 // pred_region
      %366 = dma.done [#allocation3], 512
    $region25: #{tpu_custom_call.1} parent=1 // pred_fallthru
      _
    // Predicated region
    $region26: #{tpu_custom_call.1} parent=1 // pred_check
      _
    $region27: #{tpu_custom_call.1} parent=1 // pred_check_branch
      %368 = sbr.rel (0) target = $region29
    $region28: #{tpu_custom_call.1} parent=1 // pred_region
      %369 = dma.done [#allocation5], 16
    $region29: #{tpu_custom_call.1} parent=1 // pred_fallthru
      _
    %370 = vsyncpa [#allocation3], 1
    %371 = vsyncpa [#allocation5], 1

</llo_original>
